<compile_context>
chip_gen: v7x
topology: tpu7x:2x2x1
jax: 0.10.0
libtpu: 0.0.40
codegen_flags: <defaults>
</compile_context>

<pallas_src>
import functools

import jax
import jax.numpy as jnp
from jax import lax
from jax.experimental import pallas as pl
from jax.experimental.pallas import tpu as pltpu


def _round_up(x, m):
    return ((x + m - 1) // m) * m


def _vmem_need_bytes(tm, d, in_itemsize):
    in_bufs = 2 * 2 * tm * d * in_itemsize    # 2 inputs x double buffering
    out_bufs = 2 * 8 * tm * 4                 # (1, 8, tm) f32 output x double buffering
    temps = 10 * tm * tm * 4                  # sim / arg / contrib / mask temporaries
    return in_bufs + out_bufs + temps


def _pick_tm(n, d, in_itemsize, tile_rows):
    """Row-tile size: multiple of 128 when possible, VMEM-budget aware."""
    if tile_rows is not None:                 # explicit override (tests)
        return min(_round_up(tile_rows, 8), _round_up(n, 8))
    if n <= 128:
        return _round_up(n, 8)
    try:
        kind = jax.devices()[0].device_kind.lower()
    except Exception:  # pragma: no cover - defensive
        kind = ""
    is_v5e = ("v5 lite" in kind) or ("v5e" in kind)
    # v5e: match the 128x128 MXU / single vst slot; don't oversize the epilogue.
    candidates = (512, 384, 256, 128) if is_v5e else (1024, 512, 384, 256, 128)
    budget = 44 * 1024 * 1024                 # safe vs. v7x's 64 MiB physical VMEM
    tm = 128
    for cand in candidates:
        if _vmem_need_bytes(cand, d, in_itemsize) <= budget:
            tm = cand
            break
    return min(tm, _round_up(n, 128))


def _loss_kernel(bi_ref, bj_ref, w_ref, lhs_ref, rhs_ref, out_ref, *,
                 ppc, my_u, my_l, eps):
    c = pl.program_id(0)   # pair-chunk (parallel axis; one chunk per TC on v7x)
    t = pl.program_id(1)   # pair index within the chunk (arbitrary axis)

    @pl.when(t == 0)
    def _init():
        out_ref[...] = jnp.zeros_like(out_ref)

    ni = lhs_ref[...]      # rows already L2-normalized in the wrapper
    nj = rhs_ref[...]

    # (tm, tm) similarity tile on the MXU; contract the last dims of both
    # operands so no transpose is ever materialized.
    # TODO(synk): verify via pl.lower_as_mlir that this NT form emits no XLU
    # vxpose at large D; if it does, feed a pre-transposed (D, tm) RHS block.
    sim = lax.dot_general(
        ni, nj,
        dimension_numbers=(((1,), (1,)), ((), ())),
        preferred_element_type=jnp.float32,
    )

    pos = sim > my_u
    neg = sim < my_l
    # my_u >= my_l  =>  pos/neg masks are disjoint, so one log covers both.
    arg = jnp.where(pos, sim, 1.0 - sim)
    contrib = jnp.where(pos | neg, -jnp.log(jnp.clip(arg, eps, 1.0)), 0.0)

    # Layout-preserving fold of (tm, tm) into a lane-dense (8, tm) slab:
    # splitting the leading (sublane-block) axis keeps the native (8, 128)
    # tiling, so the reduction is pure VALU adds -- no per-step XLU tree
    # reduce and no vector->scalar SMEM round trip.
    tm = contrib.shape[0]
    reduced = contrib.reshape(tm // 8, 8, tm).sum(axis=0)

    # Weight: 1 for diagonal blocks, 2 for off-diagonal blocks (each stands in
    # for its mirrored twin, sim is symmetric), 0 for padded dummy pairs.
    w = w_ref[c * ppc + t].astype(jnp.float32)
    out_ref[...] += (w * reduced)[None]


def loss_func(b, my_u=0.95, my_l=0.45, eps=1e-5, tile_rows=None, mxu_dtype=None):
    """Pallas implementation of LossFunc.forward. b: [N, D] float array."""
    assert my_u >= my_l, "fused-log path assumes disjoint pos/neg masks"
    n, d = b.shape

    # Hoisted row-wise L2 normalization (matches torch l2_norm: +1e-10 under sqrt).
    bf = b.astype(jnp.float32)
    bn = bf / jnp.sqrt(jnp.sum(bf * bf, axis=1, keepdims=True) + 1e-10)
    if mxu_dtype is not None:
        # TODO(synk): bf16 MXU feed trades 0.45/0.95 threshold parity for speed.
        bn = bn.astype(mxu_dtype)
    in_itemsize = jnp.dtype(bn.dtype).itemsize

    tm = _pick_tm(n, d, in_itemsize, tile_rows)
    n_pad = _round_up(n, tm)
    if n_pad != n:
        # Zero rows have sim == 0 with everything -> -log(1) == 0 contribution.
        bn = jnp.pad(bn, ((0, n_pad - n), (0, 0)))
    n_blk = n_pad // tm

    # Upper-triangular block traversal (j >= i), serpentine within each
    # triangle row so the RHS block index is unchanged across row boundaries.
    pairs = []
    for i in range(n_blk):
        js = list(range(i, n_blk))
        if i % 2 == 1:
            js.reverse()
        for j in js:
            pairs.append((i, j, 1 if i == j else 2))
    num_pairs = len(pairs)

    # Contiguous chunks for the "parallel" grid axis (one per TC on v7x);
    # pad with zero-weight dummy pairs so the grid is rectangular.
    num_chunks = 2 if num_pairs >= 2 else 1
    ppc = -(-num_pairs // num_chunks)
    pairs += [(0, 0, 0)] * (num_chunks * ppc - num_pairs)

    bi_arr = jnp.asarray([p[0] for p in pairs], dtype=jnp.int32)
    bj_arr = jnp.asarray([p[1] for p in pairs], dtype=jnp.int32)
    w_arr = jnp.asarray([p[2] for p in pairs], dtype=jnp.int32)

    kernel = functools.partial(
        _loss_kernel, ppc=ppc, my_u=float(my_u), my_l=float(my_l), eps=float(eps))

    def lhs_map(c, t, bi, bj, w):
        return (bi[c * ppc + t], 0)

    def rhs_map(c, t, bi, bj, w):
        return (bj[c * ppc + t], 0)

    def out_map(c, t, bi, bj, w):
        return (c, 0, 0)

    grid_spec = pltpu.PrefetchScalarGridSpec(
        num_scalar_prefetch=3,
        grid=(num_chunks, ppc),
        in_specs=[
            pl.BlockSpec((tm, d), lhs_map),
            pl.BlockSpec((tm, d), rhs_map),
        ],
        out_specs=pl.BlockSpec((1, 8, tm), out_map),
    )

    vmem_limit = int(min(max(_vmem_need_bytes(tm, d, in_itemsize) + (8 << 20),
                             32 << 20), 56 << 20))

    partial_sums = pl.pallas_call(
        kernel,
        out_shape=jax.ShapeDtypeStruct((num_chunks, 8, tm), jnp.float32),
        grid_spec=grid_spec,
        compiler_params=pltpu.CompilerParams(
            dimension_semantics=("parallel", "arbitrary"),
            vmem_limit_bytes=vmem_limit),
    )(bi_arr, bj_arr, w_arr, bn, bn)

    # One cross-lane reduction + the exactly-once division by the true N*N
    # (padded rows and zero-weight dummy pairs contributed exactly 0).
    return jnp.sum(partial_sums) / (n * n)


def _reference(b, my_u=0.95, my_l=0.45, eps=1e-5):
    b = b.astype(jnp.float32)
    bn = b / jnp.sqrt(jnp.sum(b * b, axis=1, keepdims=True) + 1e-10)
    sim = jnp.matmul(bn, bn.T, precision=jax.lax.Precision.HIGHEST)
    pos_loc = (sim > my_u).astype(jnp.float32)
    neg_loc = (sim < my_l).astype(jnp.float32)
    pos = -jnp.log(jnp.clip(sim, eps, 1.0)) * pos_loc
    neg = -jnp.log(jnp.clip(1.0 - sim, eps, 1.0)) * neg_loc
    return jnp.mean(pos + neg)


if __name__ == "__main__":
    my_u, my_l, eps = 0.95, 0.45, 1e-5

    # Small shape implied by the module: 8 samples, 32-dim embeddings.
    N, D = 8, 32
    b = jax.random.normal(jax.random.PRNGKey(0), (N, D), dtype=jnp.float32)
    loss = loss_func(b, my_u=my_u, my_l=my_l, eps=eps)
    jax.block_until_ready(loss)
    ref = _reference(b, my_u=my_u, my_l=my_l, eps=eps)
    assert jnp.allclose(loss, ref, atol=1e-5, rtol=1e-5), (loss, ref)

    # Multi-block path: symmetry weighting, serpentine order, zero-row padding,
    # zero-weight dummy pair, and the 2-chunk "parallel" split.
    N2, D2 = 20, 32
    b2 = jax.random.normal(jax.random.PRNGKey(1), (N2, D2), dtype=jnp.float32)
    loss2 = loss_func(b2, my_u=my_u, my_l=my_l, eps=eps, tile_rows=8)
    jax.block_until_ready(loss2)
    ref2 = _reference(b2, my_u=my_u, my_l=my_l, eps=eps)
    assert jnp.allclose(loss2, ref2, atol=1e-5, rtol=1e-5), (loss2, ref2)

    # Lane-dense path: tm picked as a multiple of 128 with row padding.
    N3, D3 = 300, 64
    b3 = jax.random.normal(jax.random.PRNGKey(2), (N3, D3), dtype=jnp.float32)
    loss3 = loss_func(b3, my_u=my_u, my_l=my_l, eps=eps)
    jax.block_until_ready(loss3)
    ref3 = _reference(b3, my_u=my_u, my_l=my_l, eps=eps)
    assert jnp.allclose(loss3, ref3, atol=1e-5, rtol=1e-5), (loss3, ref3)

    print("KERNEL_OK")
</pallas_src>

<mosaic_0001>
module attributes {stable_mosaic.version = 11 : i64} {
  func.func @_loss_kernel(%arg0: i32, %arg1: i32, %arg2: memref<1xi32, #tpu.memory_space<smem>>, %arg3: memref<1xi32, #tpu.memory_space<smem>>, %arg4: memref<1xi32, #tpu.memory_space<smem>>, %arg5: memref<8x32xf32, #tpu.memory_space<vmem>>, %arg6: memref<8x32xf32, #tpu.memory_space<vmem>>, %arg7: memref<1x8x8xf32, #tpu.memory_space<vmem>>) attributes {dimension_semantics = [#tpu.dimension_semantics<parallel>, #tpu.dimension_semantics<arbitrary>], iteration_bounds = array<i64: 1, 1>, scalar_prefetch = 3 : i64, scratch_operands = 0 : i64, tpu.core_type = #tpu.core_type<tc>, window_params = [{transform_indices = @transform_0, window_bounds = array<i64: 8, 32>}, {transform_indices = @transform_1, window_bounds = array<i64: 8, 32>}, {transform_indices = @transform_2, window_bounds = array<i64: 1, 8, 8>}]} {
    %c0_i32 = arith.constant 0 : i32
    %0 = arith.cmpi eq, %arg1, %c0_i32 : i32
    %1 = arith.extui %0 : i1 to i32
    %c0_i32_0 = arith.constant 0 : i32
    %2 = arith.cmpi ne, %1, %c0_i32_0 : i32
    scf.if %2 {
      %cst_18 = arith.constant 0.000000e+00 : f32
      %36 = vector.broadcast %cst_18 : f32 to vector<1x8x8xf32>
      %c0_19 = arith.constant 0 : index
      %c0_20 = arith.constant 0 : index
      %c0_21 = arith.constant 0 : index
      %37 = vector.load %arg7[%c0_19, %c0_20, %c0_21] : memref<1x8x8xf32, #tpu.memory_space<vmem>>, vector<1x8x8xf32>
      tpu.vector_store %arg7[%c0_19, %c0_20, %c0_21], %36 {strides = array<i32>} : memref<1x8x8xf32, #tpu.memory_space<vmem>>, vector<1x8x8xf32>,
    } else {
    }
    %c0 = arith.constant 0 : index
    %c0_1 = arith.constant 0 : index
    %3 = vector.load %arg5[%c0, %c0_1] : memref<8x32xf32, #tpu.memory_space<vmem>>, vector<8x32xf32>
    %c0_2 = arith.constant 0 : index
    %c0_3 = arith.constant 0 : index
    %4 = vector.load %arg6[%c0_2, %c0_3] : memref<8x32xf32, #tpu.memory_space<vmem>>, vector<8x32xf32>
    %cst = arith.constant dense<0.000000e+00> : vector<8x8xf32>
    %5 = tpu.matmul %3, %4, %cst {dimension_numbers = #tpu.dot_dimension_numbers<[1], [1], [0], [0], [0, 0, 1, 0], [], []>} : vector<8x32xf32>, vector<8x32xf32>, vector<8x8xf32> -> vector<8x8xf32>
    %cst_4 = arith.constant 0.949999988 : f32
    %6 = vector.broadcast %cst_4 : f32 to vector<8x8xf32>
    %7 = arith.cmpf ogt, %5, %6 : vector<8x8xf32>
    %cst_5 = arith.constant 4.500000e-01 : f32
    %8 = vector.broadcast %cst_5 : f32 to vector<8x8xf32>
    %9 = arith.cmpf olt, %5, %8 : vector<8x8xf32>
    %cst_6 = arith.constant 1.000000e+00 : f32
    %10 = vector.broadcast %cst_6 : f32 to vector<8x8xf32>
    %11 = arith.subf %10, %5 : vector<8x8xf32>
    %12 = arith.select %7, %5, %11 : vector<8x8xi1>, vector<8x8xf32>
    %13 = arith.ori %7, %9 : vector<8x8xi1>
    %cst_7 = arith.constant 9.99999974E-6 : f32
    %cst_8 = arith.constant 1.000000e+00 : f32
    %14 = vector.broadcast %cst_7 : f32 to vector<8x8xf32>
    %15 = arith.maximumf %14, %12 : vector<8x8xf32>
    %16 = vector.broadcast %cst_8 : f32 to vector<8x8xf32>
    %17 = arith.minimumf %16, %15 : vector<8x8xf32>
    %18 = math.log %17 : vector<8x8xf32>
    %cst_9 = arith.constant 0.000000e+00 : f32
    %19 = vector.broadcast %cst_9 : f32 to vector<8x8xf32>
    %20 = arith.subf %19, %18 : vector<8x8xf32>
    %cst_10 = arith.constant 0.000000e+00 : f32
    %21 = vector.broadcast %cst_10 : f32 to vector<8x8xf32>
    %22 = arith.select %13, %20, %21 : vector<8x8xi1>, vector<8x8xf32>
    %23 = vector.shape_cast %22 : vector<8x8xf32> to vector<1x8x8xf32>
    %cst_11 = arith.constant dense<0.000000e+00> : vector<8x8xf32>
    %24 = vector.multi_reduction <add>, %23, %cst_11 [0] : vector<1x8x8xf32> to vector<8x8xf32>
    %c1_i32 = arith.constant 1 : i32
    %25 = arith.muli %arg0, %c1_i32 : i32
    %26 = arith.addi %25, %arg1 : i32
    %27 = arith.index_cast %26 : i32 to index
    %28 = memref.load %arg4[%27] : memref<1xi32, #tpu.memory_space<smem>>
    %29 = arith.sitofp %28 : i32 to f32
    %c0_12 = arith.constant 0 : index
    %c0_13 = arith.constant 0 : index
    %c0_14 = arith.constant 0 : index
    %30 = vector.load %arg7[%c0_12, %c0_13, %c0_14] : memref<1x8x8xf32, #tpu.memory_space<vmem>>, vector<1x8x8xf32>
    %31 = vector.broadcast %29 : f32 to vector<8x8xf32>
    %32 = arith.mulf %31, %24 : vector<8x8xf32>
    %33 = vector.shape_cast %32 : vector<8x8xf32> to vector<1x8x8xf32>
    %34 = arith.addf %30, %33 : vector<1x8x8xf32>
    %c0_15 = arith.constant 0 : index
    %c0_16 = arith.constant 0 : index
    %c0_17 = arith.constant 0 : index
    %35 = vector.load %arg7[%c0_15, %c0_16, %c0_17] : memref<1x8x8xf32, #tpu.memory_space<vmem>>, vector<1x8x8xf32>
    tpu.vector_store %arg7[%c0_15, %c0_16, %c0_17], %34 {strides = array<i32>} : memref<1x8x8xf32, #tpu.memory_space<vmem>>, vector<1x8x8xf32>,
    return
  }
  func.func @transform_0(%arg0: i32, %arg1: i32, %arg2: memref<1xi32, #tpu.memory_space<smem>>, %arg3: memref<1xi32, #tpu.memory_space<smem>>, %arg4: memref<1xi32, #tpu.memory_space<smem>>) -> (i32, i32) {
    %c1_i32 = arith.constant 1 : i32
    %0 = arith.muli %arg0, %c1_i32 : i32
    %1 = arith.addi %0, %arg1 : i32
    %2 = arith.index_cast %1 : i32 to index
    %3 = memref.load %arg2[%2] : memref<1xi32, #tpu.memory_space<smem>>
    %c0_i32 = arith.constant 0 : i32
    %c0_i32_0 = arith.constant 0 : i32
    return %3, %c0_i32 : i32, i32
  }
  func.func @transform_1(%arg0: i32, %arg1: i32, %arg2: memref<1xi32, #tpu.memory_space<smem>>, %arg3: memref<1xi32, #tpu.memory_space<smem>>, %arg4: memref<1xi32, #tpu.memory_space<smem>>) -> (i32, i32) {
    %c1_i32 = arith.constant 1 : i32
    %0 = arith.muli %arg0, %c1_i32 : i32
    %1 = arith.addi %0, %arg1 : i32
    %2 = arith.index_cast %1 : i32 to index
    %3 = memref.load %arg3[%2] : memref<1xi32, #tpu.memory_space<smem>>
    %c0_i32 = arith.constant 0 : i32
    %c0_i32_0 = arith.constant 0 : i32
    return %3, %c0_i32 : i32, i32
  }
  func.func @transform_2(%arg0: i32, %arg1: i32, %arg2: memref<1xi32, #tpu.memory_space<smem>>, %arg3: memref<1xi32, #tpu.memory_space<smem>>, %arg4: memref<1xi32, #tpu.memory_space<smem>>) -> (i32, i32, i32) {
    %c0_i32 = arith.constant 0 : i32
    %c0_i32_0 = arith.constant 0 : i32
    %c0_i32_1 = arith.constant 0 : i32
    return %arg0, %c0_i32, %c0_i32_0 : i32, i32, i32
  }
}

</mosaic_0001>

<llo_original>
// kernel: tpu_custom_call.1
$region0: #{tpu_custom_call.1}
  #allocation0 [shape = 'u32[]', space=smem, size = 0x4, offset = 0x4, fixed_abs, tag = 'smem constant byte address 0x4 - core index']
  #allocation1 [shape = 'u32[144,128]{1,0:T(1,128)}', space=vmem, size = 0x12000, scoped, tag = 'internal scratch']
  #allocation2 [shape = 's32[1]{0}', space=sflag, size = 0x4, scoped, tag = 'scoped memory for tpu_custom_call.1']
  #allocation3 [shape = 's32[1]{0:T(128)S(6)}', space=smem, size = 0x200, scoped, tag = 'prefetched SMEM operand 0']
  #allocation4 [shape = 's32[1]{0:T(128)S(6)}', space=smem, size = 0x200, scoped, tag = 'prefetched SMEM operand 1']
  #allocation5 [shape = 's32[1]{0:T(128)S(6)}', space=smem, size = 0x200, scoped, tag = 'prefetched SMEM operand 2']
  %s0 = inlined_call_operand.<no memory space> [shape: s32[1], index: 0, kind: input, shape index: {}]
  %s1 = inlined_call_operand.<no memory space> [shape: s32[1], index: 1, kind: input, shape index: {}]
  %s2 = inlined_call_operand.<no memory space> [shape: s32[1], index: 2, kind: input, shape index: {}]
  %s3 = inlined_call_operand.vmem [shape: f32[8,32], index: 3, kind: input, shape index: {}]
  %s4 = inlined_call_operand.hbm [shape: f32[8,32], index: 4, kind: input, shape index: {}]
  %s5 = inlined_call_operand.hbm [shape: f32[1,8,8], index: 5, kind: output, shape index: {}]
  %s6 = sld [smem:[#allocation0]]
  $region26: #{tpu_custom_call.1} parent=0
    _
  %s8 = ssub.s32 1, %s6
  %s9 = scalar_select 0, %s8, %s6
  %10 = sst [smem:[#allocation3]] %s0
  %11 = sst [smem:[#allocation4]] %s1
  %12 = sst [smem:[#allocation5]] %s2
  $region1: #{tpu_custom_call.1} parent=0
    #allocation6 [shape = 'u8[4096]{0}', space=vmem, size = 0x1000, scoped, tag = 'input window, operand 4, single buffered']
    #allocation7 [shape = 's32[1]{0}', space=sflag, size = 0x4, scoped, tag = 'scoped memory for tpu_custom_call.1']
    #allocation8 [shape = 's32[1]{0}', space=sflag, size = 0x4, scoped, tag = 'scoped memory for tpu_custom_call.1']
    #allocation9 [shape = 'u8[4096]{0}', space=vmem, size = 0x1000, scoped, tag = 'output window, operand 0, single buffered']
    %13 = vsyncpa [#allocation7], 0
    %14 = vsyncpa [#allocation8], 0
    // Predicated region
    $region2: #{tpu_custom_call.1} parent=1 // pred_check
      _
    $region3: #{tpu_custom_call.1} parent=1 // pred_check_branch
      %16 = sbr.rel (0) target = $region5
    $region4: #{tpu_custom_call.1} parent=1 // pred_region
      %s17 = sadd.s32 0, 0
      %s18 = sld [smem:[#allocation3 + %s17]]
      %p19 = scmp.lt.s32.totalorder %s18, 0
      %s20 = scalar_select %p19, %s18, 0
      %s21 = smul.addr %s20, 8
      %s22 = scalar_lea.vmem %s3, %s21
      %s23 = sadd.s32 0, 0
      %s24 = sld [smem:[#allocation3 + %s23]]
    $region5: #{tpu_custom_call.1} parent=1 // pred_fallthru
      _
    // Predicated region
    $region6: #{tpu_custom_call.1} parent=1 // pred_check
      _
    $region7: #{tpu_custom_call.1} parent=1 // pred_check_branch
      %26 = sbr.rel (0) target = $region9
    $region8: #{tpu_custom_call.1} parent=1 // pred_region
      %s27 = sadd.s32 0, 0
      %s28 = sld [smem:[#allocation4 + %s27]]
      %s30 = ssub.s32 128, 128
      %31 = vsyncadd [#allocation7], %s30
      %s32 = smul.addr %s28, 128
      %s33 = scalar_lea.hbm %s4, %s32
      %s35 = sshll.u32 [#allocation6], 4
      %s36 = int_to_ptr.vmem [resolvable:$true] %s35
      %38 = dma.hbm_to_vmem [thread:$0]  %s33, 128, %s36, [#allocation7]
    $region9: #{tpu_custom_call.1} parent=1 // pred_fallthru
      _
    // Predicated region
    $region10: #{tpu_custom_call.1} parent=1 // pred_check
      _
    $region11: #{tpu_custom_call.1} parent=1 // pred_check_branch
      %40 = sbr.rel (0) target = $region13
    $region12: #{tpu_custom_call.1} parent=1 // pred_region
      %41 = dma.done [#allocation7], 128
    $region13: #{tpu_custom_call.1} parent=1 // pred_fallthru
      _
    %s42 = sadd.s32 0, 0
    %s43 = sld [smem:[#allocation3 + %s42]]
    %p44 = scmp.lt.s32.totalorder %s43, 0
    %s45 = scalar_select %p44, %s43, 0
    %s46 = smul.addr %s45, 8
    %s47 = scalar_lea.vmem %s3, %s46
    %s48 = sadd.s32 0, 0
    %s49 = sld [smem:[#allocation3 + %s48]]
    %p50 = scmp.lt.s32.totalorder %s49, 0
    %s51 = scalar_select %p50, %s49, 0
    %s52 = smul.addr %s51, 8
    %s53 = scalar_lea.vmem %s3, %s52
    %s54 = sadd.s32 0, 0
    %s55 = sld [smem:[#allocation3 + %s54]]
    %s56 = sadd.s32 0, 0
    %s57 = sld [smem:[#allocation4 + %s56]]
    %p58 = scmp.eq.s32.totalorder 0, 0
    // Predicated region
    $region14: #{tpu_custom_call.1} parent=1 // pred_check
      %p59 = pneg %p58
    $region15: #{tpu_custom_call.1} parent=1 // pred_check_branch
      %61 = sbr.rel (%p59) target = $region17
    $region16: #{tpu_custom_call.1} parent=1 // pred_region
      %vm62 = vcmask 64512
      %63 = vst.msk [vmem:[#allocation9] sm:$0xff] %vm62, 0.0
    $region17: #{tpu_custom_call.1} parent=1 // pred_fallthru
      _
    %v64 = vld [vmem:[%s53] sm:$0xff]
    %v65 = vld [vmem:[#allocation6] sm:$0xff]
    %vm66 = vcmask 261120
    %v68 = vsel %vm66, %v64, 0
    %v71 = vsel %vm66, %v65, 0
    %73 = vmatprep.subr.mxu0 0.0
    %74 = vmatpush1.xpose.msra.mxu0 %v71
    %75 = vmatprep.subr.mxu0 0.0
    %76 = vmatpush1.xpose.msra.mxu0 0.0
    %77 = vmatprep.subr.mxu0 0.0
    %78 = vmatpush1.xpose.msra.mxu0 0.0
    %79 = vmatprep.subr.mxu0 0.0
    %80 = vmatpush1.xpose.msra.mxu0 0.0
    %81 = vmatprep.subr.mxu0 0.0
    %82 = vmatpush1.xpose.msra.mxu0 0.0
    %83 = vmatprep.subr.mxu0 0.0
    %84 = vmatpush1.xpose.msra.mxu0 0.0
    %85 = vmatprep.subr.mxu0 0.0
    %86 = vmatpush1.xpose.msra.mxu0 0.0
    %87 = vmatprep.subr.mxu0 0.0
    %88 = vmatpush1.xpose.msra.mxu0 0.0
    %89 = vmatprep.subr.mxu0 0.0
    %90 = vmatpush1.xpose.msra.mxu0 0.0
    %91 = vmatprep.subr.mxu0 0.0
    %92 = vmatpush1.xpose.msra.mxu0 0.0
    %93 = vmatprep.subr.mxu0 0.0
    %94 = vmatpush1.xpose.msra.mxu0 0.0
    %95 = vmatprep.subr.mxu0 0.0
    %96 = vmatpush1.xpose.msra.mxu0 0.0
    %97 = vmatprep.subr.mxu0 0.0
    %98 = vmatpush1.xpose.msra.mxu0 0.0
    %99 = vmatprep.subr.mxu0 0.0
    %100 = vmatpush1.xpose.msra.mxu0 0.0
    %101 = vmatprep.subr.mxu0 0.0
    %102 = vmatpush1.xpose.msra.mxu0 0.0
    %103 = vmatprep.subr.mxu0 0.0
    %104 = vmatpush1.xpose.msra.mxu0 0.0
    %105 = vmatprep.subr.mxu0 0.0
    %106 = vmatpush1.xpose.msra.mxu0 0.0
    %107 = vmatprep.subr.mxu0 0.0
    %108 = vmatpush1.xpose.msra.mxu0 0.0
    %109 = vmatprep.subr.mxu0 0.0
    %110 = vmatpush1.xpose.msra.mxu0 0.0
    %111 = vmatprep.subr.mxu0 0.0
    %112 = vmatpush1.xpose.msra.mxu0 0.0
    %113 = vmatprep.subr.mxu0 0.0
    %114 = vmatpush1.xpose.msra.mxu0 0.0
    %115 = vmatprep.subr.mxu0 0.0
    %116 = vmatpush1.xpose.msra.mxu0 0.0
    %117 = vmatprep.subr.mxu0 0.0
    %118 = vmatpush1.xpose.msra.mxu0 0.0
    %119 = vmatprep.subr.mxu0 0.0
    %120 = vmatpush1.xpose.msra.mxu0 0.0
    %121 = vmatprep.subr.mxu0 0.0
    %122 = vmatpush1.xpose.msra.mxu0 0.0
    %123 = vmatprep.subr.mxu0 0.0
    %124 = vmatpush1.xpose.msra.mxu0 0.0
    %125 = vmatprep.subr.mxu0 0.0
    %126 = vmatpush1.xpose.msra.mxu0 0.0
    %127 = vmatprep.subr.mxu0 0.0
    %128 = vmatpush1.xpose.msra.mxu0 0.0
    %129 = vmatprep.subr.mxu0 0.0
    %130 = vmatpush1.xpose.msra.mxu0 0.0
    %131 = vmatprep.subr.mxu0 0.0
    %132 = vmatpush1.xpose.msra.mxu0 0.0
    %133 = vmatprep.subr.mxu0 0.0
    %134 = vmatpush1.xpose.msra.mxu0 0.0
    %135 = vmatprep.subr.mxu0 0.0
    %136 = vmatpush1.xpose.msra.mxu0 0.0
    %137 = vmatprep.mubr.f32.mxu0 0.0
    %138 = vmatmul.mubr.f32.gmra.mrb[0].mxu0 %v68
    %v139 = vpop.f32.mrb[0].mxu0
    %v140 = vadd.f32 0.0, %v139
    %v141 = vpop.f32.mrb[0].mxu0
    %142 = vdwg.mxu0
    %vm143 = vcmp.gt.f32.partialorder %v140, 0.95
    %vm144 = vcmp.lt.f32.partialorder %v140, 0.45
    %v145 = vsub.f32 1.0, %v140
    %v146 = vsel %vm143, %v140, %v145
    %vm147 = vmor %vm143, %vm144
    %v148 = vmax.f32 %v146, 1e-05
    %v149 = vmin.f32 %v148, 1.0
    %v150 = vlog2.pop %v149
    %v151 = vmul.f32 %v150, 0.6931472
    %v152 = vsub.f32 0.0, %v151
    %v153 = vsel %vm147, %v152, 0.0
    %v154 = vadd.f32 %v153, 0.0
    %s155 = sadd.s32 0, 0
    %s156 = sld [smem:[#allocation5 + %s155]]
    %s157 = scvt.s32.f32 %s156
    %v158 = vld [vmem:[#allocation9] sm:$0xff]
    %v159 = vstv %s157
    %v160 = vmul.f32 %v159, %v154
    %v161 = vadd.f32 %v158, %v160
    %vm162 = vcmask 64512
    %163 = vst.msk [vmem:[#allocation9] sm:$0xff] %vm162, %v161
    // Predicated region
    $region18: #{tpu_custom_call.1} parent=1 // pred_check
      _
    $region19: #{tpu_custom_call.1} parent=1 // pred_check_branch
      %165 = sbr.rel (0) target = $region21
    $region20: #{tpu_custom_call.1} parent=1 // pred_region
      %s167 = ssub.s32 128, 128
      %168 = vsyncadd [#allocation8], %s167
      %s170 = sshll.u32 [#allocation9], 4
      %s171 = int_to_ptr.vmem [resolvable:$true] %s170
      %173 = dma.vmem_to_hbm [thread:$0]  %s171, 128, %s5, [#allocation8]
    $region21: #{tpu_custom_call.1} parent=1 // pred_fallthru
      _
    // Predicated region
    $region22: #{tpu_custom_call.1} parent=1 // pred_check
      _
    $region23: #{tpu_custom_call.1} parent=1 // pred_check_branch
      %175 = sbr.rel (0) target = $region25
    $region24: #{tpu_custom_call.1} parent=1 // pred_region
      %176 = dma.done [#allocation8], 128
    $region25: #{tpu_custom_call.1} parent=1 // pred_fallthru
      _
    %177 = vsyncpa [#allocation7], 1
    %178 = vsyncpa [#allocation8], 1

</llo_original>
